<compile_context>
chip_gen: v7x
topology: tpu7x:2x2x1
jax: 0.10.0
libtpu: 0.0.40
codegen_flags: <defaults>
</compile_context>

<pallas_src>
import jax
import jax.numpy as jnp
from jax.experimental import pallas as pl
from jax.experimental.pallas import tpu as pltpu


_VMEM_DATA_BUDGET = 24 * 1024 * 1024   # budget for double-buffered in + out tiles
_VMEM_LIMIT = 48 * 1024 * 1024         # explicit scoped-VMEM request (< v7x 64 MiB)


def _pick_batch_tile(batch, row_bytes, budget_bytes=_VMEM_DATA_BUDGET):
    """Batch tile: largest that keeps the 2x-buffered in+out blocks under the
    VMEM budget, is a multiple of 8 (sublane rule) unless it covers the whole
    batch, and leaves >=2 grid steps for megacore when the batch allows it."""
    max_bt = max(1, budget_bytes // (4 * row_bytes))
    if batch <= 8:
        return batch                        # block dim == full array dim -> legal
    target = min(max_bt, max(8, pl.cdiv(batch, 2)))
    bt = (target // 8) * 8
    if bt < 8:
        # TODO(synk): rows too large for the VMEM budget; needs the two-pass
        # L-tiled variant (accumulate channel sums over L tiles, then a second
        # sweep applying the gate).
        bt = 8
    return bt


def _se_kernel(x_ref, pool_ref, w1t_ref, w2t_ref, expand_ref, o_ref):
    """One batch tile of the SE forward.

    x_ref, o_ref : (Bt, C*L)  lane-dense input / output tiles (native dtype)
    pool_ref     : (C*L, C)   pool[c*L + l, c] = 1/L   (squeeze = x @ pool)
    w1t_ref      : (C, H)     first  Linear weight, transposed
    w2t_ref      : (H, C)     second Linear weight, transposed
    expand_ref   : (C, C*L)   expand[c, c*L + l] = 1   (gate broadcast over L)
    """
    x = x_ref[...]                                                     # native dtype

    # Squeeze: per-channel mean over L as a lane-dense MXU matmul (f32 accum).
    y = jnp.dot(x, pool_ref[...], preferred_element_type=jnp.float32)  # (Bt, C)

    # Excitation: Linear -> ReLU -> Linear -> Sigmoid (both bias-free).
    h = jnp.dot(y.astype(w1t_ref.dtype), w1t_ref[...],
                preferred_element_type=jnp.float32)                    # (Bt, H)
    h = jnp.maximum(h, 0.0)
    z = jnp.dot(h.astype(w2t_ref.dtype), w2t_ref[...],
                preferred_element_type=jnp.float32)                    # (Bt, C)

    # sigmoid(z) = 1 / (1 + exp(-z)); approx reciprocal on the EUP slot plus one
    # (essentially free) Newton step to recover full f32 accuracy.
    denom = 1.0 + jnp.exp(-z)
    r = pl.reciprocal(denom, approx=True)
    s = r * (2.0 - denom * r)                                          # (Bt, C)

    # Scale: broadcast the per-channel gate over L with a tiny matmul, then one
    # native-dtype elementwise multiply on the lane-dense tile.
    gate = jnp.dot(s.astype(expand_ref.dtype), expand_ref[...],
                   preferred_element_type=jnp.float32)                 # (Bt, C*L)
    o_ref[...] = (x * gate.astype(x.dtype)).astype(o_ref.dtype)


def se_blk(x, w1, w2):
    """SEBlk forward.

    x:  (B, C, L)  input features (any float dtype)
    w1: (C//r, C)  first Linear weight (PyTorch (out, in) layout)
    w2: (C, C//r)  second Linear weight (PyTorch (out, in) layout)
    returns (B, C, L) in x's dtype.
    """
    B, C, L = x.shape
    H = w1.shape[0]
    CL = C * L
    itemsize = jnp.dtype(x.dtype).itemsize

    # Lane-dense layout: fold (C, L) into one trailing axis (free reshape).
    x2 = x.reshape(B, CL)

    # Transposed weights so the kernel uses plain y @ W; keep native dtype.
    w1t = jnp.transpose(w1)                                            # (C, H)
    w2t = jnp.transpose(w2)                                            # (H, C)

    # Constant pooling / expansion matrices for the flattened layout.
    eye = jnp.eye(C, dtype=jnp.float32)
    pool = (jnp.repeat(eye, L, axis=0) * (1.0 / L)).astype(x.dtype)    # (C*L, C)
    expand = jnp.repeat(eye, L, axis=1).astype(x.dtype)                # (C, C*L)

    bt = _pick_batch_tile(B, CL * itemsize)
    grid = (pl.cdiv(B, bt),)

    cost = pl.CostEstimate(
        flops=int(3 * B * CL + 4 * B * C * H),
        transcendentals=int(B * C),
        bytes_accessed=int(2 * B * CL * itemsize
                           + 2 * CL * C * itemsize
                           + 2 * C * H * jnp.dtype(w1.dtype).itemsize),
    )

    out2 = pl.pallas_call(
        _se_kernel,
        out_shape=jax.ShapeDtypeStruct((B, CL), x.dtype),
        grid=grid,
        in_specs=[
            pl.BlockSpec((bt, CL), lambda b: (b, 0)),      # x tile (pipelined)
            pl.BlockSpec((CL, C), lambda b: (0, 0)),       # pool   (VMEM-resident)
            pl.BlockSpec((C, H), lambda b: (0, 0)),        # w1^T   (VMEM-resident)
            pl.BlockSpec((H, C), lambda b: (0, 0)),        # w2^T   (VMEM-resident)
            pl.BlockSpec((C, CL), lambda b: (0, 0)),       # expand (VMEM-resident)
        ],
        out_specs=pl.BlockSpec((bt, CL), lambda b: (b, 0)),
        compiler_params=pltpu.CompilerParams(
            dimension_semantics=("parallel",),
            vmem_limit_bytes=_VMEM_LIMIT,
        ),
        cost_estimate=cost,
    )(x2, pool, w1t, w2t, expand)

    return out2.reshape(B, C, L)


if __name__ == "__main__":
    # Shapes consistent with the module: batch=2, ch_in=64, length=16,
    # reduction=16 -> hidden = 64 // 16 = 4.
    B, C, L, reduction = 2, 64, 16, 16
    H = C // reduction

    key = jax.random.PRNGKey(0)
    kx, k1, k2 = jax.random.split(key, 3)
    x = jax.random.normal(kx, (B, C, L), dtype=jnp.float32)
    # Deterministic synthetic weights (PyTorch nn.Linear layout: (out, in)).
    w1 = jax.random.normal(k1, (H, C), dtype=jnp.float32) * 0.1
    w2 = jax.random.normal(k2, (C, H), dtype=jnp.float32) * 0.1

    out = se_blk(x, w1, w2)
    jax.block_until_ready(out)

    # Pure-JAX reference of the same math (HIGHEST precision so the reference
    # itself is f32-exact on TPU).
    hp = jax.lax.Precision.HIGHEST
    y_ref = jnp.mean(x, axis=-1)
    h_ref = jnp.maximum(jnp.dot(y_ref, w1.T, precision=hp), 0.0)
    s_ref = jax.nn.sigmoid(jnp.dot(h_ref, w2.T, precision=hp))
    ref = x * s_ref[:, :, None]

    # Tolerance leaves headroom for possible reduced-precision MXU passes inside
    # the kernel's matmuls; structural bugs would show as O(0.1) errors.
    max_err = float(jnp.max(jnp.abs(out - ref)))
    assert jnp.allclose(out, ref, atol=1e-3, rtol=1e-2), max_err

    print("KERNEL_OK")
</pallas_src>

<mosaic_0001>
module attributes {stable_mosaic.version = 11 : i64} {
  func.func @_se_kernel(%arg0: i32, %arg1: memref<2x1024xf32, #tpu.memory_space<vmem>>, %arg2: memref<1024x64xf32, #tpu.memory_space<vmem>>, %arg3: memref<64x4xf32, #tpu.memory_space<vmem>>, %arg4: memref<4x64xf32, #tpu.memory_space<vmem>>, %arg5: memref<64x1024xf32, #tpu.memory_space<vmem>>, %arg6: memref<2x1024xf32, #tpu.memory_space<vmem>>) attributes {dimension_semantics = [#tpu.dimension_semantics<parallel>], iteration_bounds = array<i64: 1>, scalar_prefetch = 0 : i64, scratch_operands = 0 : i64, tpu.core_type = #tpu.core_type<tc>, window_params = [{transform_indices = @transform_0, window_bounds = array<i64: 2, 1024>}, {pipeline_mode = #tpu.pipeline_mode<synchronous>, transform_indices = @transform_1, window_bounds = array<i64: 1024, 64>}, {pipeline_mode = #tpu.pipeline_mode<synchronous>, transform_indices = @transform_2, window_bounds = array<i64: 64, 4>}, {pipeline_mode = #tpu.pipeline_mode<synchronous>, transform_indices = @transform_3, window_bounds = array<i64: 4, 64>}, {pipeline_mode = #tpu.pipeline_mode<synchronous>, transform_indices = @transform_4, window_bounds = array<i64: 64, 1024>}, {transform_indices = @transform_5, window_bounds = array<i64: 2, 1024>}]} {
    %c0 = arith.constant 0 : index
    %c0_0 = arith.constant 0 : index
    %0 = vector.load %arg1[%c0, %c0_0] : memref<2x1024xf32, #tpu.memory_space<vmem>>, vector<2x1024xf32>
    %c0_1 = arith.constant 0 : index
    %c0_2 = arith.constant 0 : index
    %1 = vector.load %arg2[%c0_1, %c0_2] : memref<1024x64xf32, #tpu.memory_space<vmem>>, vector<1024x64xf32>
    %cst = arith.constant dense<0.000000e+00> : vector<2x64xf32>
    %2 = tpu.matmul %0, %1, %cst {dimension_numbers = #tpu.dot_dimension_numbers<[1], [0], [0], [1], [0, 0, 1, 1], [], []>} : vector<2x1024xf32>, vector<1024x64xf32>, vector<2x64xf32> -> vector<2x64xf32>
    %c0_3 = arith.constant 0 : index
    %c0_4 = arith.constant 0 : index
    %3 = vector.load %arg3[%c0_3, %c0_4] : memref<64x4xf32, #tpu.memory_space<vmem>>, vector<64x4xf32>
    %cst_5 = arith.constant dense<0.000000e+00> : vector<2x4xf32>
    %4 = tpu.matmul %2, %3, %cst_5 {dimension_numbers = #tpu.dot_dimension_numbers<[1], [0], [0], [1], [0, 0, 1, 1], [], []>} : vector<2x64xf32>, vector<64x4xf32>, vector<2x4xf32> -> vector<2x4xf32>
    %cst_6 = arith.constant 0.000000e+00 : f32
    %5 = vector.broadcast %cst_6 : f32 to vector<2x4xf32>
    %6 = arith.maximumf %4, %5 : vector<2x4xf32>
    %c0_7 = arith.constant 0 : index
    %c0_8 = arith.constant 0 : index
    %7 = vector.load %arg4[%c0_7, %c0_8] : memref<4x64xf32, #tpu.memory_space<vmem>>, vector<4x64xf32>
    %cst_9 = arith.constant dense<0.000000e+00> : vector<2x64xf32>
    %8 = tpu.matmul %6, %7, %cst_9 {dimension_numbers = #tpu.dot_dimension_numbers<[1], [0], [0], [1], [0, 0, 1, 1], [], []>} : vector<2x4xf32>, vector<4x64xf32>, vector<2x64xf32> -> vector<2x64xf32>
    %cst_10 = arith.constant 0.000000e+00 : f32
    %9 = vector.broadcast %cst_10 : f32 to vector<2x64xf32>
    %10 = arith.subf %9, %8 : vector<2x64xf32>
    %11 = math.exp %10 : vector<2x64xf32>
    %cst_11 = arith.constant 1.000000e+00 : f32
    %12 = vector.broadcast %cst_11 : f32 to vector<2x64xf32>
    %13 = arith.addf %12, %11 : vector<2x64xf32>
    %14 = tpu.reciprocal %13 {approx = true} : vector<2x64xf32> -> vector<2x64xf32>
    %15 = arith.mulf %13, %14 : vector<2x64xf32>
    %cst_12 = arith.constant 2.000000e+00 : f32
    %16 = vector.broadcast %cst_12 : f32 to vector<2x64xf32>
    %17 = arith.subf %16, %15 : vector<2x64xf32>
    %18 = arith.mulf %14, %17 : vector<2x64xf32>
    %c0_13 = arith.constant 0 : index
    %c0_14 = arith.constant 0 : index
    %19 = vector.load %arg5[%c0_13, %c0_14] : memref<64x1024xf32, #tpu.memory_space<vmem>>, vector<64x1024xf32>
    %cst_15 = arith.constant dense<0.000000e+00> : vector<2x1024xf32>
    %20 = tpu.matmul %18, %19, %cst_15 {dimension_numbers = #tpu.dot_dimension_numbers<[1], [0], [0], [1], [0, 0, 1, 1], [], []>} : vector<2x64xf32>, vector<64x1024xf32>, vector<2x1024xf32> -> vector<2x1024xf32>
    %21 = arith.mulf %0, %20 : vector<2x1024xf32>
    %c0_16 = arith.constant 0 : index
    %c0_17 = arith.constant 0 : index
    %22 = vector.load %arg6[%c0_16, %c0_17] : memref<2x1024xf32, #tpu.memory_space<vmem>>, vector<2x1024xf32>
    tpu.vector_store %arg6[%c0_16, %c0_17], %21 {strides = array<i32>} : memref<2x1024xf32, #tpu.memory_space<vmem>>, vector<2x1024xf32>,
    return
  }
  func.func @transform_0(%arg0: i32) -> (i32, i32) {
    %c0_i32 = arith.constant 0 : i32
    %c0_i32_0 = arith.constant 0 : i32
    return %arg0, %c0_i32 : i32, i32
  }
  func.func @transform_1(%arg0: i32) -> (i32, i32) {
    %c0_i32 = arith.constant 0 : i32
    %c0_i32_0 = arith.constant 0 : i32
    %c0_i32_1 = arith.constant 0 : i32
    return %c0_i32, %c0_i32_0 : i32, i32
  }
  func.func @transform_2(%arg0: i32) -> (i32, i32) {
    %c0_i32 = arith.constant 0 : i32
    %c0_i32_0 = arith.constant 0 : i32
    %c0_i32_1 = arith.constant 0 : i32
    return %c0_i32, %c0_i32_0 : i32, i32
  }
  func.func @transform_3(%arg0: i32) -> (i32, i32) {
    %c0_i32 = arith.constant 0 : i32
    %c0_i32_0 = arith.constant 0 : i32
    %c0_i32_1 = arith.constant 0 : i32
    return %c0_i32, %c0_i32_0 : i32, i32
  }
  func.func @transform_4(%arg0: i32) -> (i32, i32) {
    %c0_i32 = arith.constant 0 : i32
    %c0_i32_0 = arith.constant 0 : i32
    %c0_i32_1 = arith.constant 0 : i32
    return %c0_i32, %c0_i32_0 : i32, i32
  }
  func.func @transform_5(%arg0: i32) -> (i32, i32) {
    %c0_i32 = arith.constant 0 : i32
    %c0_i32_0 = arith.constant 0 : i32
    return %arg0, %c0_i32 : i32, i32
  }
}

</mosaic_0001>

<llo_original>
// kernel: tpu_custom_call.1
$region0: #{tpu_custom_call.1}
  #allocation0 [shape = 'u32[]', space=smem, size = 0x4, offset = 0x4, fixed_abs, tag = 'smem constant byte address 0x4 - core index']
  #allocation1 [shape = 'u32[144,128]{1,0:T(1,128)}', space=vmem, size = 0x12000, scoped, tag = 'internal scratch']
  %s0 = inlined_call_operand.vmem [shape: f32[2,1024], index: 0, kind: input, shape index: {}]
  %s1 = inlined_call_operand.vmem [shape: f32[1024,64], index: 1, kind: input, shape index: {}]
  %s2 = inlined_call_operand.vmem [shape: f32[64,4], index: 2, kind: input, shape index: {}]
  %s3 = inlined_call_operand.vmem [shape: f32[4,64], index: 3, kind: input, shape index: {}]
  %s4 = inlined_call_operand.vmem [shape: f32[64,1024], index: 4, kind: input, shape index: {}]
  %s5 = inlined_call_operand.hbm [shape: f32[2,1024], index: 5, kind: output, shape index: {}]
  %s6 = sld [smem:[#allocation0]]
  $region30: #{tpu_custom_call.1} parent=0
    _
  %s8 = ssub.s32 1, %s6
  %s9 = scalar_select 0, %s8, %s6
  $region1: #{tpu_custom_call.1} parent=0
    #allocation2 [shape = 'u8[8192]{0}', space=vmem, size = 0x2000, scoped, tag = 'output window, operand 0, single buffered']
    #allocation3 [shape = 's32[1]{0}', space=sflag, size = 0x4, scoped, tag = 'scoped memory for tpu_custom_call.1']
    %10 = vsyncpa [#allocation3], 0
    // Predicated region
    $region2: #{tpu_custom_call.1} parent=1 // pred_check
      _
    $region3: #{tpu_custom_call.1} parent=1 // pred_check_branch
      %12 = sbr.rel (0) target = $region5
    $region4: #{tpu_custom_call.1} parent=1 // pred_region
      _
    $region5: #{tpu_custom_call.1} parent=1 // pred_fallthru
      _
    // Predicated region
    $region6: #{tpu_custom_call.1} parent=1 // pred_check
      _
    $region7: #{tpu_custom_call.1} parent=1 // pred_check_branch
      %14 = sbr.rel (0) target = $region9
    $region8: #{tpu_custom_call.1} parent=1 // pred_region
      _
    $region9: #{tpu_custom_call.1} parent=1 // pred_fallthru
      _
    // Predicated region
    $region10: #{tpu_custom_call.1} parent=1 // pred_check
      _
    $region11: #{tpu_custom_call.1} parent=1 // pred_check_branch
      %16 = sbr.rel (0) target = $region13
    $region12: #{tpu_custom_call.1} parent=1 // pred_region
      _
    $region13: #{tpu_custom_call.1} parent=1 // pred_fallthru
      _
    // Predicated region
    $region14: #{tpu_custom_call.1} parent=1 // pred_check
      _
    $region15: #{tpu_custom_call.1} parent=1 // pred_check_branch
      %18 = sbr.rel (0) target = $region17
    $region16: #{tpu_custom_call.1} parent=1 // pred_region
      _
    $region17: #{tpu_custom_call.1} parent=1 // pred_fallthru
      _
    // Predicated region
    $region18: #{tpu_custom_call.1} parent=1 // pred_check
      _
    $region19: #{tpu_custom_call.1} parent=1 // pred_check_branch
      %20 = sbr.rel (0) target = $region21
    $region20: #{tpu_custom_call.1} parent=1 // pred_region
      _
    $region21: #{tpu_custom_call.1} parent=1 // pred_fallthru
      _
    %v21 = vld [vmem:[%s0] sm:$0xff]
    %v22 = vld [vmem:[%s0 + $0x8] sm:$0xff]
    %v23 = vld [vmem:[%s1] sm:$0xff]
    %v24 = vld [vmem:[%s1 + $0x8] sm:$0xff]
    %v25 = vld [vmem:[%s1 + $0x10] sm:$0xff]
    %v26 = vld [vmem:[%s1 + $0x18] sm:$0xff]
    %v27 = vld [vmem:[%s1 + $0x20] sm:$0xff]
    %v28 = vld [vmem:[%s1 + $0x28] sm:$0xff]
    %v29 = vld [vmem:[%s1 + $0x30] sm:$0xff]
    %v30 = vld [vmem:[%s1 + $0x38] sm:$0xff]
    %v31 = vld [vmem:[%s1 + $0x40] sm:$0xff]
    %v32 = vld [vmem:[%s1 + $0x48] sm:$0xff]
    %v33 = vld [vmem:[%s1 + $0x50] sm:$0xff]
    %v34 = vld [vmem:[%s1 + $0x58] sm:$0xff]
    %v35 = vld [vmem:[%s1 + $0x60] sm:$0xff]
    %v36 = vld [vmem:[%s1 + $0x68] sm:$0xff]
    %v37 = vld [vmem:[%s1 + $0x70] sm:$0xff]
    %v38 = vld [vmem:[%s1 + $0x78] sm:$0xff]
    %v39 = vld [vmem:[%s1 + $0x80] sm:$0xff]
    %v40 = vld [vmem:[%s1 + $0x88] sm:$0xff]
    %v41 = vld [vmem:[%s1 + $0x90] sm:$0xff]
    %v42 = vld [vmem:[%s1 + $0x98] sm:$0xff]
    %v43 = vld [vmem:[%s1 + $0xa0] sm:$0xff]
    %v44 = vld [vmem:[%s1 + $0xa8] sm:$0xff]
    %v45 = vld [vmem:[%s1 + $0xb0] sm:$0xff]
    %v46 = vld [vmem:[%s1 + $0xb8] sm:$0xff]
    %v47 = vld [vmem:[%s1 + $0xc0] sm:$0xff]
    %v48 = vld [vmem:[%s1 + $0xc8] sm:$0xff]
    %v49 = vld [vmem:[%s1 + $0xd0] sm:$0xff]
    %v50 = vld [vmem:[%s1 + $0xd8] sm:$0xff]
    %v51 = vld [vmem:[%s1 + $0xe0] sm:$0xff]
    %v52 = vld [vmem:[%s1 + $0xe8] sm:$0xff]
    %v53 = vld [vmem:[%s1 + $0xf0] sm:$0xff]
    %v54 = vld [vmem:[%s1 + $0xf8] sm:$0xff]
    %v55 = vld [vmem:[%s1 + $0x100] sm:$0xff]
    %v56 = vld [vmem:[%s1 + $0x108] sm:$0xff]
    %v57 = vld [vmem:[%s1 + $0x110] sm:$0xff]
    %v58 = vld [vmem:[%s1 + $0x118] sm:$0xff]
    %v59 = vld [vmem:[%s1 + $0x120] sm:$0xff]
    %v60 = vld [vmem:[%s1 + $0x128] sm:$0xff]
    %v61 = vld [vmem:[%s1 + $0x130] sm:$0xff]
    %v62 = vld [vmem:[%s1 + $0x138] sm:$0xff]
    %v63 = vld [vmem:[%s1 + $0x140] sm:$0xff]
    %v64 = vld [vmem:[%s1 + $0x148] sm:$0xff]
    %v65 = vld [vmem:[%s1 + $0x150] sm:$0xff]
    %v66 = vld [vmem:[%s1 + $0x158] sm:$0xff]
    %v67 = vld [vmem:[%s1 + $0x160] sm:$0xff]
    %v68 = vld [vmem:[%s1 + $0x168] sm:$0xff]
    %v69 = vld [vmem:[%s1 + $0x170] sm:$0xff]
    %v70 = vld [vmem:[%s1 + $0x178] sm:$0xff]
    %v71 = vld [vmem:[%s1 + $0x180] sm:$0xff]
    %v72 = vld [vmem:[%s1 + $0x188] sm:$0xff]
    %v73 = vld [vmem:[%s1 + $0x190] sm:$0xff]
    %v74 = vld [vmem:[%s1 + $0x198] sm:$0xff]
    %v75 = vld [vmem:[%s1 + $0x1a0] sm:$0xff]
    %v76 = vld [vmem:[%s1 + $0x1a8] sm:$0xff]
    %v77 = vld [vmem:[%s1 + $0x1b0] sm:$0xff]
    %v78 = vld [vmem:[%s1 + $0x1b8] sm:$0xff]
    %v79 = vld [vmem:[%s1 + $0x1c0] sm:$0xff]
    %v80 = vld [vmem:[%s1 + $0x1c8] sm:$0xff]
    %v81 = vld [vmem:[%s1 + $0x1d0] sm:$0xff]
    %v82 = vld [vmem:[%s1 + $0x1d8] sm:$0xff]
    %v83 = vld [vmem:[%s1 + $0x1e0] sm:$0xff]
    %v84 = vld [vmem:[%s1 + $0x1e8] sm:$0xff]
    %v85 = vld [vmem:[%s1 + $0x1f0] sm:$0xff]
    %v86 = vld [vmem:[%s1 + $0x1f8] sm:$0xff]
    %v87 = vld [vmem:[%s1 + $0x200] sm:$0xff]
    %v88 = vld [vmem:[%s1 + $0x208] sm:$0xff]
    %v89 = vld [vmem:[%s1 + $0x210] sm:$0xff]
    %v90 = vld [vmem:[%s1 + $0x218] sm:$0xff]
    %v91 = vld [vmem:[%s1 + $0x220] sm:$0xff]
    %v92 = vld [vmem:[%s1 + $0x228] sm:$0xff]
    %v93 = vld [vmem:[%s1 + $0x230] sm:$0xff]
    %v94 = vld [vmem:[%s1 + $0x238] sm:$0xff]
    %v95 = vld [vmem:[%s1 + $0x240] sm:$0xff]
    %v96 = vld [vmem:[%s1 + $0x248] sm:$0xff]
    %v97 = vld [vmem:[%s1 + $0x250] sm:$0xff]
    %v98 = vld [vmem:[%s1 + $0x258] sm:$0xff]
    %v99 = vld [vmem:[%s1 + $0x260] sm:$0xff]
    %v100 = vld [vmem:[%s1 + $0x268] sm:$0xff]
    %v101 = vld [vmem:[%s1 + $0x270] sm:$0xff]
    %v102 = vld [vmem:[%s1 + $0x278] sm:$0xff]
    %v103 = vld [vmem:[%s1 + $0x280] sm:$0xff]
    %v104 = vld [vmem:[%s1 + $0x288] sm:$0xff]
    %v105 = vld [vmem:[%s1 + $0x290] sm:$0xff]
    %v106 = vld [vmem:[%s1 + $0x298] sm:$0xff]
    %v107 = vld [vmem:[%s1 + $0x2a0] sm:$0xff]
    %v108 = vld [vmem:[%s1 + $0x2a8] sm:$0xff]
    %v109 = vld [vmem:[%s1 + $0x2b0] sm:$0xff]
    %v110 = vld [vmem:[%s1 + $0x2b8] sm:$0xff]
    %v111 = vld [vmem:[%s1 + $0x2c0] sm:$0xff]
    %v112 = vld [vmem:[%s1 + $0x2c8] sm:$0xff]
    %v113 = vld [vmem:[%s1 + $0x2d0] sm:$0xff]
    %v114 = vld [vmem:[%s1 + $0x2d8] sm:$0xff]
    %v115 = vld [vmem:[%s1 + $0x2e0] sm:$0xff]
    %v116 = vld [vmem:[%s1 + $0x2e8] sm:$0xff]
    %v117 = vld [vmem:[%s1 + $0x2f0] sm:$0xff]
    %v118 = vld [vmem:[%s1 + $0x2f8] sm:$0xff]
    %v119 = vld [vmem:[%s1 + $0x300] sm:$0xff]
    %v120 = vld [vmem:[%s1 + $0x308] sm:$0xff]
    %v121 = vld [vmem:[%s1 + $0x310] sm:$0xff]
    %v122 = vld [vmem:[%s1 + $0x318] sm:$0xff]
    %v123 = vld [vmem:[%s1 + $0x320] sm:$0xff]
    %v124 = vld [vmem:[%s1 + $0x328] sm:$0xff]
    %v125 = vld [vmem:[%s1 + $0x330] sm:$0xff]
    %v126 = vld [vmem:[%s1 + $0x338] sm:$0xff]
    %v127 = vld [vmem:[%s1 + $0x340] sm:$0xff]
    %v128 = vld [vmem:[%s1 + $0x348] sm:$0xff]
    %v129 = vld [vmem:[%s1 + $0x350] sm:$0xff]
    %v130 = vld [vmem:[%s1 + $0x358] sm:$0xff]
    %v131 = vld [vmem:[%s1 + $0x360] sm:$0xff]
    %v132 = vld [vmem:[%s1 + $0x368] sm:$0xff]
    %v133 = vld [vmem:[%s1 + $0x370] sm:$0xff]
    %v134 = vld [vmem:[%s1 + $0x378] sm:$0xff]
    %v135 = vld [vmem:[%s1 + $0x380] sm:$0xff]
    %v136 = vld [vmem:[%s1 + $0x388] sm:$0xff]
    %v137 = vld [vmem:[%s1 + $0x390] sm:$0xff]
    %v138 = vld [vmem:[%s1 + $0x398] sm:$0xff]
    %v139 = vld [vmem:[%s1 + $0x3a0] sm:$0xff]
    %v140 = vld [vmem:[%s1 + $0x3a8] sm:$0xff]
    %v141 = vld [vmem:[%s1 + $0x3b0] sm:$0xff]
    %v142 = vld [vmem:[%s1 + $0x3b8] sm:$0xff]
    %v143 = vld [vmem:[%s1 + $0x3c0] sm:$0xff]
    %v144 = vld [vmem:[%s1 + $0x3c8] sm:$0xff]
    %v145 = vld [vmem:[%s1 + $0x3d0] sm:$0xff]
    %v146 = vld [vmem:[%s1 + $0x3d8] sm:$0xff]
    %v147 = vld [vmem:[%s1 + $0x3e0] sm:$0xff]
    %v148 = vld [vmem:[%s1 + $0x3e8] sm:$0xff]
    %v149 = vld [vmem:[%s1 + $0x3f0] sm:$0xff]
    %v150 = vld [vmem:[%s1 + $0x3f8] sm:$0xff]
    %v153 = vcombine.high %v21, %v21
    %v155 = vunpack.c.l.s4 1983009808
    %v156 = vunpack.c.0.s8 %v155
    %v157 = vlaneseq
    %v158 = vshrl.u32 %v157, 7
    %v159 = vsub.s32 %v156, %v158
    %v160 = vrot.slane %v21, %v159
    %v162 = vunpack.c.l.s4 1983009808
    %v163 = vunpack.c.0.s8 %v162
    %v164 = vlaneseq
    %v165 = vshrl.u32 %v164, 7
    %v166 = vsub.s32 %v163, %v165
    %v167 = vrot.slane %v153, %v166
    %v168 = vcombine.high %v160, %v160
    %v169 = vcombine.high %v167, %v167
    %v170 = vcombine.high %v22, %v22
    %v172 = vunpack.c.l.s4 1983009808
    %v173 = vunpack.c.0.s8 %v172
    %v174 = vlaneseq
    %v175 = vshrl.u32 %v174, 7
    %v176 = vsub.s32 %v173, %v175
    %v177 = vrot.slane %v22, %v176
    %v179 = vunpack.c.l.s4 1983009808
    %v180 = vunpack.c.0.s8 %v179
    %v181 = vlaneseq
    %v182 = vshrl.u32 %v181, 7
    %v183 = vsub.s32 %v180, %v182
    %v184 = vrot.slane %v170, %v183
    %v185 = vcombine.high %v177, %v177
    %v186 = vcombine.high %v184, %v184
    %195 = vmatprep.subr.mxu0 0.0
    %196 = vmatpush1.msra.mxu0 %v23
    %197 = vmatprep.subr.mxu0 0.0
    %198 = vmatpush1.msra.mxu0 %v24
    %199 = vmatprep.subr.mxu0 0.0
    %200 = vmatpush1.msra.mxu0 %v25
    %201 = vmatprep.subr.mxu0 0.0
    %202 = vmatpush1.msra.mxu0 %v26
    %203 = vmatprep.subr.mxu0 0.0
    %204 = vmatpush1.msra.mxu0 %v27
    %205 = vmatprep.subr.mxu0 0.0
    %206 = vmatpush1.msra.mxu0 %v28
    %207 = vmatprep.subr.mxu0 0.0
    %208 = vmatpush1.msra.mxu0 %v29
    %209 = vmatprep.subr.mxu0 0.0
    %210 = vmatpush1.msra.mxu0 %v30
    %211 = vmatprep.subr.mxu0 0.0
    %212 = vmatpush1.msra.mxu0 %v31
    %213 = vmatprep.subr.mxu0 0.0
    %214 = vmatpush1.msra.mxu0 %v32
    %215 = vmatprep.subr.mxu0 0.0
    %216 = vmatpush1.msra.mxu0 %v33
    %217 = vmatprep.subr.mxu0 0.0
    %218 = vmatpush1.msra.mxu0 %v34
    %219 = vmatprep.subr.mxu0 0.0
    %220 = vmatpush1.msra.mxu0 %v35
    %221 = vmatprep.subr.mxu0 0.0
    %222 = vmatpush1.msra.mxu0 %v36
    %223 = vmatprep.subr.mxu0 0.0
    %224 = vmatpush1.msra.mxu0 %v37
    %225 = vmatprep.subr.mxu0 0.0
    %226 = vmatpush1.msra.mxu0 %v38
    %227 = vmatprep.subr.mxu0 0.0
    %228 = vmatpush1.msra.mxu0 %v39
    %229 = vmatprep.subr.mxu0 0.0
    %230 = vmatpush1.msra.mxu0 %v40
    %231 = vmatprep.subr.mxu0 0.0
    %232 = vmatpush1.msra.mxu0 %v41
    %233 = vmatprep.subr.mxu0 0.0
    %234 = vmatpush1.msra.mxu0 %v42
    %235 = vmatprep.subr.mxu0 0.0
    %236 = vmatpush1.msra.mxu0 %v43
    %237 = vmatprep.subr.mxu0 0.0
    %238 = vmatpush1.msra.mxu0 %v44
    %239 = vmatprep.subr.mxu0 0.0
    %240 = vmatpush1.msra.mxu0 %v45
    %241 = vmatprep.subr.mxu0 0.0
    %242 = vmatpush1.msra.mxu0 %v46
    %243 = vmatprep.subr.mxu0 0.0
    %244 = vmatpush1.msra.mxu0 %v47
    %245 = vmatprep.subr.mxu0 0.0
    %246 = vmatpush1.msra.mxu0 %v48
    %247 = vmatprep.subr.mxu0 0.0
    %248 = vmatpush1.msra.mxu0 %v49
    %249 = vmatprep.subr.mxu0 0.0
    %250 = vmatpush1.msra.mxu0 %v50
    %251 = vmatprep.subr.mxu0 0.0
    %252 = vmatpush1.msra.mxu0 %v51
    %253 = vmatprep.subr.mxu0 0.0
    %254 = vmatpush1.msra.mxu0 %v52
    %255 = vmatprep.subr.mxu0 0.0
    %256 = vmatpush1.msra.mxu0 %v53
    %257 = vmatprep.subr.mxu0 0.0
    %258 = vmatpush1.msra.mxu0 %v54
    %259 = vmatprep.mubr.f32.mxu0 %v168
    %260 = vmatmul.mubr.f32.gmra.mrb[0].mxu0 %v160
    %v261 = vpop.f32.mrb[0].mxu0
    %v262 = vadd.f32 0.0, %v261
    %v263 = vpop.f32.mrb[0].mxu0
    %264 = vdwg.mxu0
    %265 = vmatprep.subr.mxu0 0.0
    %266 = vmatpush1.msra.mxu0 %v55
    %267 = vmatprep.subr.mxu0 0.0
    %268 = vmatpush1.msra.mxu0 %v56
    %269 = vmatprep.subr.mxu0 0.0
    %270 = vmatpush1.msra.mxu0 %v57
    %271 = vmatprep.subr.mxu0 0.0
    %272 = vmatpush1.msra.mxu0 %v58
    %273 = vmatprep.subr.mxu0 0.0
    %274 = vmatpush1.msra.mxu0 %v59
    %275 = vmatprep.subr.mxu0 0.0
    %276 = vmatpush1.msra.mxu0 %v60
    %277 = vmatprep.subr.mxu0 0.0
    %278 = vmatpush1.msra.mxu0 %v61
    %279 = vmatprep.subr.mxu0 0.0
    %280 = vmatpush1.msra.mxu0 %v62
    %281 = vmatprep.subr.mxu0 0.0
    %282 = vmatpush1.msra.mxu0 %v63
    %283 = vmatprep.subr.mxu0 0.0
    %284 = vmatpush1.msra.mxu0 %v64
    %285 = vmatprep.subr.mxu0 0.0
    %286 = vmatpush1.msra.mxu0 %v65
    %287 = vmatprep.subr.mxu0 0.0
    %288 = vmatpush1.msra.mxu0 %v66
    %289 = vmatprep.subr.mxu0 0.0
    %290 = vmatpush1.msra.mxu0 %v67
    %291 = vmatprep.subr.mxu0 0.0
    %292 = vmatpush1.msra.mxu0 %v68
    %293 = vmatprep.subr.mxu0 0.0
    %294 = vmatpush1.msra.mxu0 %v69
    %295 = vmatprep.subr.mxu0 0.0
    %296 = vmatpush1.msra.mxu0 %v70
    %297 = vmatprep.subr.mxu0 0.0
    %298 = vmatpush1.msra.mxu0 %v71
    %299 = vmatprep.subr.mxu0 0.0
    %300 = vmatpush1.msra.mxu0 %v72
    %301 = vmatprep.subr.mxu0 0.0
    %302 = vmatpush1.msra.mxu0 %v73
    %303 = vmatprep.subr.mxu0 0.0
    %304 = vmatpush1.msra.mxu0 %v74
    %305 = vmatprep.subr.mxu0 0.0
    %306 = vmatpush1.msra.mxu0 %v75
    %307 = vmatprep.subr.mxu0 0.0
    %308 = vmatpush1.msra.mxu0 %v76
    %309 = vmatprep.subr.mxu0 0.0
    %310 = vmatpush1.msra.mxu0 %v77
    %311 = vmatprep.subr.mxu0 0.0
    %312 = vmatpush1.msra.mxu0 %v78
    %313 = vmatprep.subr.mxu0 0.0
    %314 = vmatpush1.msra.mxu0 %v79
    %315 = vmatprep.subr.mxu0 0.0
    %316 = vmatpush1.msra.mxu0 %v80
    %317 = vmatprep.subr.mxu0 0.0
    %318 = vmatpush1.msra.mxu0 %v81
    %319 = vmatprep.subr.mxu0 0.0
    %320 = vmatpush1.msra.mxu0 %v82
    %321 = vmatprep.subr.mxu0 0.0
    %322 = vmatpush1.msra.mxu0 %v83
    %323 = vmatprep.subr.mxu0 0.0
    %324 = vmatpush1.msra.mxu0 %v84
    %325 = vmatprep.subr.mxu0 0.0
    %326 = vmatpush1.msra.mxu0 %v85
    %327 = vmatprep.subr.mxu0 0.0
    %328 = vmatpush1.msra.mxu0 %v86
    %329 = vmatprep.mubr.f32.mxu0 %v169
    %330 = vmatmul.mubr.f32.gmra.mrb[0].mxu0 %v167
    %v331 = vpop.f32.mrb[0].mxu0
    %v332 = vadd.f32 %v262, %v331
    %v333 = vpop.f32.mrb[0].mxu0
    %334 = vdwg.mxu0
    %335 = vmatprep.subr.mxu0 0.0
    %336 = vmatpush1.msra.mxu0 %v87
    %337 = vmatprep.subr.mxu0 0.0
    %338 = vmatpush1.msra.mxu0 %v88
    %339 = vmatprep.subr.mxu0 0.0
    %340 = vmatpush1.msra.mxu0 %v89
    %341 = vmatprep.subr.mxu0 0.0
    %342 = vmatpush1.msra.mxu0 %v90
    %343 = vmatprep.subr.mxu0 0.0
    %344 = vmatpush1.msra.mxu0 %v91
    %345 = vmatprep.subr.mxu0 0.0
    %346 = vmatpush1.msra.mxu0 %v92
    %347 = vmatprep.subr.mxu0 0.0
    %348 = vmatpush1.msra.mxu0 %v93
    %349 = vmatprep.subr.mxu0 0.0
    %350 = vmatpush1.msra.mxu0 %v94
    %351 = vmatprep.subr.mxu0 0.0
    %352 = vmatpush1.msra.mxu0 %v95
    %353 = vmatprep.subr.mxu0 0.0
    %354 = vmatpush1.msra.mxu0 %v96
    %355 = vmatprep.subr.mxu0 0.0
    %356 = vmatpush1.msra.mxu0 %v97
    %357 = vmatprep.subr.mxu0 0.0
    %358 = vmatpush1.msra.mxu0 %v98
    %359 = vmatprep.subr.mxu0 0.0
    %360 = vmatpush1.msra.mxu0 %v99
    %361 = vmatprep.subr.mxu0 0.0
    %362 = vmatpush1.msra.mxu0 %v100
    %363 = vmatprep.subr.mxu0 0.0
    %364 = vmatpush1.msra.mxu0 %v101
    %365 = vmatprep.subr.mxu0 0.0
    %366 = vmatpush1.msra.mxu0 %v102
    %367 = vmatprep.subr.mxu0 0.0
    %368 = vmatpush1.msra.mxu0 %v103
    %369 = vmatprep.subr.mxu0 0.0
    %370 = vmatpush1.msra.mxu0 %v104
    %371 = vmatprep.subr.mxu0 0.0
    %372 = vmatpush1.msra.mxu0 %v105
    %373 = vmatprep.subr.mxu0 0.0
    %374 = vmatpush1.msra.mxu0 %v106
    %375 = vmatprep.subr.mxu0 0.0
    %376 = vmatpush1.msra.mxu0 %v107
    %377 = vmatprep.subr.mxu0 0.0
    %378 = vmatpush1.msra.mxu0 %v108
    %379 = vmatprep.subr.mxu0 0.0
    %380 = vmatpush1.msra.mxu0 %v109
    %381 = vmatprep.subr.mxu0 0.0
    %382 = vmatpush1.msra.mxu0 %v110
    %383 = vmatprep.subr.mxu0 0.0
    %384 = vmatpush1.msra.mxu0 %v111
    %385 = vmatprep.subr.mxu0 0.0
    %386 = vmatpush1.msra.mxu0 %v112
    %387 = vmatprep.subr.mxu0 0.0
    %388 = vmatpush1.msra.mxu0 %v113
    %389 = vmatprep.subr.mxu0 0.0
    %390 = vmatpush1.msra.mxu0 %v114
    %391 = vmatprep.subr.mxu0 0.0
    %392 = vmatpush1.msra.mxu0 %v115
    %393 = vmatprep.subr.mxu0 0.0
    %394 = vmatpush1.msra.mxu0 %v116
    %395 = vmatprep.subr.mxu0 0.0
    %396 = vmatpush1.msra.mxu0 %v117
    %397 = vmatprep.subr.mxu0 0.0
    %398 = vmatpush1.msra.mxu0 %v118
    %399 = vmatprep.mubr.f32.mxu0 %v185
    %400 = vmatmul.mubr.f32.gmra.mrb[0].mxu0 %v177
    %v401 = vpop.f32.mrb[0].mxu0
    %v402 = vadd.f32 %v332, %v401
    %v403 = vpop.f32.mrb[0].mxu0
    %404 = vdwg.mxu0
    %405 = vmatprep.subr.mxu0 0.0
    %406 = vmatpush1.msra.mxu0 %v119
    %407 = vmatprep.subr.mxu0 0.0
    %408 = vmatpush1.msra.mxu0 %v120
    %409 = vmatprep.subr.mxu0 0.0
    %410 = vmatpush1.msra.mxu0 %v121
    %411 = vmatprep.subr.mxu0 0.0
    %412 = vmatpush1.msra.mxu0 %v122
    %413 = vmatprep.subr.mxu0 0.0
    %414 = vmatpush1.msra.mxu0 %v123
    %415 = vmatprep.subr.mxu0 0.0
    %416 = vmatpush1.msra.mxu0 %v124
    %417 = vmatprep.subr.mxu0 0.0
    %418 = vmatpush1.msra.mxu0 %v125
    %419 = vmatprep.subr.mxu0 0.0
    %420 = vmatpush1.msra.mxu0 %v126
    %421 = vmatprep.subr.mxu0 0.0
    %422 = vmatpush1.msra.mxu0 %v127
    %423 = vmatprep.subr.mxu0 0.0
    %424 = vmatpush1.msra.mxu0 %v128
    %425 = vmatprep.subr.mxu0 0.0
    %426 = vmatpush1.msra.mxu0 %v129
    %427 = vmatprep.subr.mxu0 0.0
    %428 = vmatpush1.msra.mxu0 %v130
    %429 = vmatprep.subr.mxu0 0.0
    %430 = vmatpush1.msra.mxu0 %v131
    %431 = vmatprep.subr.mxu0 0.0
    %432 = vmatpush1.msra.mxu0 %v132
    %433 = vmatprep.subr.mxu0 0.0
    %434 = vmatpush1.msra.mxu0 %v133
    %435 = vmatprep.subr.mxu0 0.0
    %436 = vmatpush1.msra.mxu0 %v134
    %437 = vmatprep.subr.mxu0 0.0
    %438 = vmatpush1.msra.mxu0 %v135
    %439 = vmatprep.subr.mxu0 0.0
    %440 = vmatpush1.msra.mxu0 %v136
    %441 = vmatprep.subr.mxu0 0.0
    %442 = vmatpush1.msra.mxu0 %v137
    %443 = vmatprep.subr.mxu0 0.0
    %444 = vmatpush1.msra.mxu0 %v138
    %445 = vmatprep.subr.mxu0 0.0
    %446 = vmatpush1.msra.mxu0 %v139
    %447 = vmatprep.subr.mxu0 0.0
    %448 = vmatpush1.msra.mxu0 %v140
    %449 = vmatprep.subr.mxu0 0.0
    %450 = vmatpush1.msra.mxu0 %v141
    %451 = vmatprep.subr.mxu0 0.0
    %452 = vmatpush1.msra.mxu0 %v142
    %453 = vmatprep.subr.mxu0 0.0
    %454 = vmatpush1.msra.mxu0 %v143
    %455 = vmatprep.subr.mxu0 0.0
    %456 = vmatpush1.msra.mxu0 %v144
    %457 = vmatprep.subr.mxu0 0.0
    %458 = vmatpush1.msra.mxu0 %v145
    %459 = vmatprep.subr.mxu0 0.0
    %460 = vmatpush1.msra.mxu0 %v146
    %461 = vmatprep.subr.mxu0 0.0
    %462 = vmatpush1.msra.mxu0 %v147
    %463 = vmatprep.subr.mxu0 0.0
    %464 = vmatpush1.msra.mxu0 %v148
    %465 = vmatprep.subr.mxu0 0.0
    %466 = vmatpush1.msra.mxu0 %v149
    %467 = vmatprep.subr.mxu0 0.0
    %468 = vmatpush1.msra.mxu0 %v150
    %469 = vmatprep.mubr.f32.mxu0 %v186
    %470 = vmatmul.mubr.f32.gmra.mrb[0].mxu0 %v184
    %v471 = vpop.f32.mrb[0].mxu0
    %v472 = vadd.f32 %v402, %v471
    %v473 = vpop.f32.mrb[0].mxu0
    %474 = vdwg.mxu0
    %v475 = vld [vmem:[%s2] sm:$0xff]
    %v476 = vld [vmem:[%s2 + $0x8] sm:$0xff]
    %v477 = vld [vmem:[%s2 + $0x10] sm:$0xff]
    %v478 = vld [vmem:[%s2 + $0x18] sm:$0xff]
    %v479 = vld [vmem:[%s2 + $0x20] sm:$0xff]
    %v480 = vld [vmem:[%s2 + $0x28] sm:$0xff]
    %v481 = vld [vmem:[%s2 + $0x30] sm:$0xff]
    %v482 = vld [vmem:[%s2 + $0x38] sm:$0xff]
    %vm483 = vcmask 523264
    %v485 = vsel %vm483, %v472, 0
    %487 = vmatprep.subr.mxu0 0.0
    %488 = vmatpush1.msra.mxu0 %v475
    %489 = vmatprep.subr.mxu0 0.0
    %490 = vmatpush1.msra.mxu0 %v476
    %491 = vmatprep.subr.mxu0 0.0
    %492 = vmatpush1.msra.mxu0 %v477
    %493 = vmatprep.subr.mxu0 0.0
    %494 = vmatpush1.msra.mxu0 %v478
    %495 = vmatprep.subr.mxu0 0.0
    %496 = vmatpush1.msra.mxu0 %v479
    %497 = vmatprep.subr.mxu0 0.0
    %498 = vmatpush1.msra.mxu0 %v480
    %499 = vmatprep.subr.mxu0 0.0
    %500 = vmatpush1.msra.mxu0 %v481
    %501 = vmatprep.subr.mxu0 0.0
    %502 = vmatpush1.msra.mxu0 %v482
    %503 = vmatprep.subr.mxu0 0.0
    %504 = vmatpush1.msra.mxu0 0.0
    %505 = vmatprep.subr.mxu0 0.0
    %506 = vmatpush1.msra.mxu0 0.0
    %507 = vmatprep.subr.mxu0 0.0
    %508 = vmatpush1.msra.mxu0 0.0
    %509 = vmatprep.subr.mxu0 0.0
    %510 = vmatpush1.msra.mxu0 0.0
    %511 = vmatprep.subr.mxu0 0.0
    %512 = vmatpush1.msra.mxu0 0.0
    %513 = vmatprep.subr.mxu0 0.0
    %514 = vmatpush1.msra.mxu0 0.0
    %515 = vmatprep.subr.mxu0 0.0
    %516 = vmatpush1.msra.mxu0 0.0
    %517 = vmatprep.subr.mxu0 0.0
    %518 = vmatpush1.msra.mxu0 0.0
    %519 = vmatprep.subr.mxu0 0.0
    %520 = vmatpush1.msra.mxu0 0.0
    %521 = vmatprep.subr.mxu0 0.0
    %522 = vmatpush1.msra.mxu0 0.0
    %523 = vmatprep.subr.mxu0 0.0
    %524 = vmatpush1.msra.mxu0 0.0
    %525 = vmatprep.subr.mxu0 0.0
    %526 = vmatpush1.msra.mxu0 0.0
    %527 = vmatprep.subr.mxu0 0.0
    %528 = vmatpush1.msra.mxu0 0.0
    %529 = vmatprep.subr.mxu0 0.0
    %530 = vmatpush1.msra.mxu0 0.0
    %531 = vmatprep.subr.mxu0 0.0
    %532 = vmatpush1.msra.mxu0 0.0
    %533 = vmatprep.subr.mxu0 0.0
    %534 = vmatpush1.msra.mxu0 0.0
    %535 = vmatprep.subr.mxu0 0.0
    %536 = vmatpush1.msra.mxu0 0.0
    %537 = vmatprep.subr.mxu0 0.0
    %538 = vmatpush1.msra.mxu0 0.0
    %539 = vmatprep.subr.mxu0 0.0
    %540 = vmatpush1.msra.mxu0 0.0
    %541 = vmatprep.subr.mxu0 0.0
    %542 = vmatpush1.msra.mxu0 0.0
    %543 = vmatprep.subr.mxu0 0.0
    %544 = vmatpush1.msra.mxu0 0.0
    %545 = vmatprep.subr.mxu0 0.0
    %546 = vmatpush1.msra.mxu0 0.0
    %547 = vmatprep.subr.mxu0 0.0
    %548 = vmatpush1.msra.mxu0 0.0
    %549 = vmatprep.subr.mxu0 0.0
    %550 = vmatpush1.msra.mxu0 0.0
    %551 = vmatprep.mubr.f32.mxu0 0.0
    %552 = vmatmul.mubr.f32.gmra.mrb[0].mxu0 %v485
    %v553 = vpop.f32.mrb[0].mxu0
    %v554 = vadd.f32 0.0, %v553
    %v555 = vpop.f32.mrb[0].mxu0
    %556 = vdwg.mxu0
    %v557 = vmax.f32 %v554, 0.0
    %v558 = vld [vmem:[%s3] sm:$0xf]
    %vm559 = vcmask 31744
    %v561 = vsel %vm559, %v557, 0
    %vm563 = vcmask 1043456
    %v565 = vsel %vm563, %v558, 0
    %567 = vmatprep.subr.mxu0 0.0
    %568 = vmatpush1.msra.mxu0 %v565
    %569 = vmatprep.subr.mxu0 0.0
    %570 = vmatpush1.msra.mxu0 0.0
    %571 = vmatprep.subr.mxu0 0.0
    %572 = vmatpush1.msra.mxu0 0.0
    %573 = vmatprep.subr.mxu0 0.0
    %574 = vmatpush1.msra.mxu0 0.0
    %575 = vmatprep.subr.mxu0 0.0
    %576 = vmatpush1.msra.mxu0 0.0
    %577 = vmatprep.subr.mxu0 0.0
    %578 = vmatpush1.msra.mxu0 0.0
    %579 = vmatprep.subr.mxu0 0.0
    %580 = vmatpush1.msra.mxu0 0.0
    %581 = vmatprep.subr.mxu0 0.0
    %582 = vmatpush1.msra.mxu0 0.0
    %583 = vmatprep.subr.mxu0 0.0
    %584 = vmatpush1.msra.mxu0 0.0
    %585 = vmatprep.subr.mxu0 0.0
    %586 = vmatpush1.msra.mxu0 0.0
    %587 = vmatprep.subr.mxu0 0.0
    %588 = vmatpush1.msra.mxu0 0.0
    %589 = vmatprep.subr.mxu0 0.0
    %590 = vmatpush1.msra.mxu0 0.0
    %591 = vmatprep.subr.mxu0 0.0
    %592 = vmatpush1.msra.mxu0 0.0
    %593 = vmatprep.subr.mxu0 0.0
    %594 = vmatpush1.msra.mxu0 0.0
    %595 = vmatprep.subr.mxu0 0.0
    %596 = vmatpush1.msra.mxu0 0.0
    %597 = vmatprep.subr.mxu0 0.0
    %598 = vmatpush1.msra.mxu0 0.0
    %599 = vmatprep.subr.mxu0 0.0
    %600 = vmatpush1.msra.mxu0 0.0
    %601 = vmatprep.subr.mxu0 0.0
    %602 = vmatpush1.msra.mxu0 0.0
    %603 = vmatprep.subr.mxu0 0.0
    %604 = vmatpush1.msra.mxu0 0.0
    %605 = vmatprep.subr.mxu0 0.0
    %606 = vmatpush1.msra.mxu0 0.0
    %607 = vmatprep.subr.mxu0 0.0
    %608 = vmatpush1.msra.mxu0 0.0
    %609 = vmatprep.subr.mxu0 0.0
    %610 = vmatpush1.msra.mxu0 0.0
    %611 = vmatprep.subr.mxu0 0.0
    %612 = vmatpush1.msra.mxu0 0.0
    %613 = vmatprep.subr.mxu0 0.0
    %614 = vmatpush1.msra.mxu0 0.0
    %615 = vmatprep.subr.mxu0 0.0
    %616 = vmatpush1.msra.mxu0 0.0
    %617 = vmatprep.subr.mxu0 0.0
    %618 = vmatpush1.msra.mxu0 0.0
    %619 = vmatprep.subr.mxu0 0.0
    %620 = vmatpush1.msra.mxu0 0.0
    %621 = vmatprep.subr.mxu0 0.0
    %622 = vmatpush1.msra.mxu0 0.0
    %623 = vmatprep.subr.mxu0 0.0
    %624 = vmatpush1.msra.mxu0 0.0
    %625 = vmatprep.subr.mxu0 0.0
    %626 = vmatpush1.msra.mxu0 0.0
    %627 = vmatprep.subr.mxu0 0.0
    %628 = vmatpush1.msra.mxu0 0.0
    %629 = vmatprep.subr.mxu0 0.0
    %630 = vmatpush1.msra.mxu0 0.0
    %631 = vmatprep.mubr.f32.mxu0 0.0
    %632 = vmatmul.mubr.f32.gmra.mrb[0].mxu0 %v561
    %v633 = vpop.f32.mrb[0].mxu0
    %v634 = vadd.f32 0.0, %v633
    %v635 = vpop.f32.mrb[0].mxu0
    %636 = vdwg.mxu0
    %v637 = vsub.f32 0.0, %v634
    %v638 = vmul.f32 %v637, 1.442695
    %v639 = vpow.pop %v638
    %v640 = vadd.f32 %v639, 1.0
    %v641 = vrcp.pop %v640
    %v642 = vmul.f32 %v640, %v641
    %v643 = vsub.f32 2.0, %v642
    %v644 = vmul.f32 %v641, %v643
    %v645 = vld [vmem:[%s4] sm:$0xff]
    %v646 = vld [vmem:[%s4 + $0x8] sm:$0xff]
    %v647 = vld [vmem:[%s4 + $0x10] sm:$0xff]
    %v648 = vld [vmem:[%s4 + $0x18] sm:$0xff]
    %v649 = vld [vmem:[%s4 + $0x20] sm:$0xff]
    %v650 = vld [vmem:[%s4 + $0x28] sm:$0xff]
    %v651 = vld [vmem:[%s4 + $0x30] sm:$0xff]
    %v652 = vld [vmem:[%s4 + $0x38] sm:$0xff]
    %v653 = vld [vmem:[%s4 + $0x40] sm:$0xff]
    %v654 = vld [vmem:[%s4 + $0x48] sm:$0xff]
    %v655 = vld [vmem:[%s4 + $0x50] sm:$0xff]
    %v656 = vld [vmem:[%s4 + $0x58] sm:$0xff]
    %v657 = vld [vmem:[%s4 + $0x60] sm:$0xff]
    %v658 = vld [vmem:[%s4 + $0x68] sm:$0xff]
    %v659 = vld [vmem:[%s4 + $0x70] sm:$0xff]
    %v660 = vld [vmem:[%s4 + $0x78] sm:$0xff]
    %v661 = vld [vmem:[%s4 + $0x80] sm:$0xff]
    %v662 = vld [vmem:[%s4 + $0x88] sm:$0xff]
    %v663 = vld [vmem:[%s4 + $0x90] sm:$0xff]
    %v664 = vld [vmem:[%s4 + $0x98] sm:$0xff]
    %v665 = vld [vmem:[%s4 + $0xa0] sm:$0xff]
    %v666 = vld [vmem:[%s4 + $0xa8] sm:$0xff]
    %v667 = vld [vmem:[%s4 + $0xb0] sm:$0xff]
    %v668 = vld [vmem:[%s4 + $0xb8] sm:$0xff]
    %v669 = vld [vmem:[%s4 + $0xc0] sm:$0xff]
    %v670 = vld [vmem:[%s4 + $0xc8] sm:$0xff]
    %v671 = vld [vmem:[%s4 + $0xd0] sm:$0xff]
    %v672 = vld [vmem:[%s4 + $0xd8] sm:$0xff]
    %v673 = vld [vmem:[%s4 + $0xe0] sm:$0xff]
    %v674 = vld [vmem:[%s4 + $0xe8] sm:$0xff]
    %v675 = vld [vmem:[%s4 + $0xf0] sm:$0xff]
    %v676 = vld [vmem:[%s4 + $0xf8] sm:$0xff]
    %v677 = vld [vmem:[%s4 + $0x100] sm:$0xff]
    %v678 = vld [vmem:[%s4 + $0x108] sm:$0xff]
    %v679 = vld [vmem:[%s4 + $0x110] sm:$0xff]
    %v680 = vld [vmem:[%s4 + $0x118] sm:$0xff]
    %v681 = vld [vmem:[%s4 + $0x120] sm:$0xff]
    %v682 = vld [vmem:[%s4 + $0x128] sm:$0xff]
    %v683 = vld [vmem:[%s4 + $0x130] sm:$0xff]
    %v684 = vld [vmem:[%s4 + $0x138] sm:$0xff]
    %v685 = vld [vmem:[%s4 + $0x140] sm:$0xff]
    %v686 = vld [vmem:[%s4 + $0x148] sm:$0xff]
    %v687 = vld [vmem:[%s4 + $0x150] sm:$0xff]
    %v688 = vld [vmem:[%s4 + $0x158] sm:$0xff]
    %v689 = vld [vmem:[%s4 + $0x160] sm:$0xff]
    %v690 = vld [vmem:[%s4 + $0x168] sm:$0xff]
    %v691 = vld [vmem:[%s4 + $0x170] sm:$0xff]
    %v692 = vld [vmem:[%s4 + $0x178] sm:$0xff]
    %v693 = vld [vmem:[%s4 + $0x180] sm:$0xff]
    %v694 = vld [vmem:[%s4 + $0x188] sm:$0xff]
    %v695 = vld [vmem:[%s4 + $0x190] sm:$0xff]
    %v696 = vld [vmem:[%s4 + $0x198] sm:$0xff]
    %v697 = vld [vmem:[%s4 + $0x1a0] sm:$0xff]
    %v698 = vld [vmem:[%s4 + $0x1a8] sm:$0xff]
    %v699 = vld [vmem:[%s4 + $0x1b0] sm:$0xff]
    %v700 = vld [vmem:[%s4 + $0x1b8] sm:$0xff]
    %v701 = vld [vmem:[%s4 + $0x1c0] sm:$0xff]
    %v702 = vld [vmem:[%s4 + $0x1c8] sm:$0xff]
    %v703 = vld [vmem:[%s4 + $0x1d0] sm:$0xff]
    %v704 = vld [vmem:[%s4 + $0x1d8] sm:$0xff]
    %v705 = vld [vmem:[%s4 + $0x1e0] sm:$0xff]
    %v706 = vld [vmem:[%s4 + $0x1e8] sm:$0xff]
    %v707 = vld [vmem:[%s4 + $0x1f0] sm:$0xff]
    %v708 = vld [vmem:[%s4 + $0x1f8] sm:$0xff]
    %v710 = vsel %vm483, %v644, 0
    %712 = vmatprep.subr.mxu0 %v646
    %713 = vmatpush1.msra.mxu0 %v645
    %714 = vmatprep.subr.mxu0 %v654
    %715 = vmatpush1.msra.mxu0 %v653
    %716 = vmatprep.subr.mxu0 %v662
    %717 = vmatpush1.msra.mxu0 %v661
    %718 = vmatprep.subr.mxu0 %v670
    %719 = vmatpush1.msra.mxu0 %v669
    %720 = vmatprep.subr.mxu0 %v678
    %721 = vmatpush1.msra.mxu0 %v677
    %722 = vmatprep.subr.mxu0 %v686
    %723 = vmatpush1.msra.mxu0 %v685
    %724 = vmatprep.subr.mxu0 %v694
    %725 = vmatpush1.msra.mxu0 %v693
    %726 = vmatprep.subr.mxu0 %v702
    %727 = vmatpush1.msra.mxu0 %v701
    %728 = vmatprep.subr.mxu0 0.0
    %729 = vmatpush1.msra.mxu0 0.0
    %730 = vmatprep.subr.mxu0 0.0
    %731 = vmatpush1.msra.mxu0 0.0
    %732 = vmatprep.subr.mxu0 0.0
    %733 = vmatpush1.msra.mxu0 0.0
    %734 = vmatprep.subr.mxu0 0.0
    %735 = vmatpush1.msra.mxu0 0.0
    %736 = vmatprep.subr.mxu0 0.0
    %737 = vmatpush1.msra.mxu0 0.0
    %738 = vmatprep.subr.mxu0 0.0
    %739 = vmatpush1.msra.mxu0 0.0
    %740 = vmatprep.subr.mxu0 0.0
    %741 = vmatpush1.msra.mxu0 0.0
    %742 = vmatprep.subr.mxu0 0.0
    %743 = vmatpush1.msra.mxu0 0.0
    %744 = vmatprep.subr.mxu0 0.0
    %745 = vmatpush1.msra.mxu0 0.0
    %746 = vmatprep.subr.mxu0 0.0
    %747 = vmatpush1.msra.mxu0 0.0
    %748 = vmatprep.subr.mxu0 0.0
    %749 = vmatpush1.msra.mxu0 0.0
    %750 = vmatprep.subr.mxu0 0.0
    %751 = vmatpush1.msra.mxu0 0.0
    %752 = vmatprep.subr.mxu0 0.0
    %753 = vmatpush1.msra.mxu0 0.0
    %754 = vmatprep.subr.mxu0 0.0
    %755 = vmatpush1.msra.mxu0 0.0
    %756 = vmatprep.subr.mxu0 0.0
    %757 = vmatpush1.msra.mxu0 0.0
    %758 = vmatprep.subr.mxu0 0.0
    %759 = vmatpush1.msra.mxu0 0.0
    %760 = vmatprep.subr.mxu0 0.0
    %761 = vmatpush1.msra.mxu0 0.0
    %762 = vmatprep.subr.mxu0 0.0
    %763 = vmatpush1.msra.mxu0 0.0
    %764 = vmatprep.subr.mxu0 0.0
    %765 = vmatpush1.msra.mxu0 0.0
    %766 = vmatprep.subr.mxu0 0.0
    %767 = vmatpush1.msra.mxu0 0.0
    %768 = vmatprep.subr.mxu0 0.0
    %769 = vmatpush1.msra.mxu0 0.0
    %770 = vmatprep.subr.mxu0 0.0
    %771 = vmatpush1.msra.mxu0 0.0
    %772 = vmatprep.subr.mxu0 0.0
    %773 = vmatpush1.msra.mxu0 0.0
    %774 = vmatprep.subr.mxu0 0.0
    %775 = vmatpush1.msra.mxu0 0.0
    %776 = vmatprep.mubr.f32.mxu0 0.0
    %777 = vmatmul.mubr.f32.gmra.mrb[0].mxu0 %v710
    %v778 = vpop.f32.mrb[0].mxu0
    %v779 = vadd.f32 0.0, %v778
    %v780 = vpop.f32.mrb[0].mxu0
    %v781 = vadd.f32 0.0, %v780
    %782 = vdwg.mxu0
    %783 = vmatprep.subr.mxu0 %v648
    %784 = vmatpush1.msra.mxu0 %v647
    %785 = vmatprep.subr.mxu0 %v656
    %786 = vmatpush1.msra.mxu0 %v655
    %787 = vmatprep.subr.mxu0 %v664
    %788 = vmatpush1.msra.mxu0 %v663
    %789 = vmatprep.subr.mxu0 %v672
    %790 = vmatpush1.msra.mxu0 %v671
    %791 = vmatprep.subr.mxu0 %v680
    %792 = vmatpush1.msra.mxu0 %v679
    %793 = vmatprep.subr.mxu0 %v688
    %794 = vmatpush1.msra.mxu0 %v687
    %795 = vmatprep.subr.mxu0 %v696
    %796 = vmatpush1.msra.mxu0 %v695
    %797 = vmatprep.subr.mxu0 %v704
    %798 = vmatpush1.msra.mxu0 %v703
    %799 = vmatprep.subr.mxu0 0.0
    %800 = vmatpush1.msra.mxu0 0.0
    %801 = vmatprep.subr.mxu0 0.0
    %802 = vmatpush1.msra.mxu0 0.0
    %803 = vmatprep.subr.mxu0 0.0
    %804 = vmatpush1.msra.mxu0 0.0
    %805 = vmatprep.subr.mxu0 0.0
    %806 = vmatpush1.msra.mxu0 0.0
    %807 = vmatprep.subr.mxu0 0.0
    %808 = vmatpush1.msra.mxu0 0.0
    %809 = vmatprep.subr.mxu0 0.0
    %810 = vmatpush1.msra.mxu0 0.0
    %811 = vmatprep.subr.mxu0 0.0
    %812 = vmatpush1.msra.mxu0 0.0
    %813 = vmatprep.subr.mxu0 0.0
    %814 = vmatpush1.msra.mxu0 0.0
    %815 = vmatprep.subr.mxu0 0.0
    %816 = vmatpush1.msra.mxu0 0.0
    %817 = vmatprep.subr.mxu0 0.0
    %818 = vmatpush1.msra.mxu0 0.0
    %819 = vmatprep.subr.mxu0 0.0
    %820 = vmatpush1.msra.mxu0 0.0
    %821 = vmatprep.subr.mxu0 0.0
    %822 = vmatpush1.msra.mxu0 0.0
    %823 = vmatprep.subr.mxu0 0.0
    %824 = vmatpush1.msra.mxu0 0.0
    %825 = vmatprep.subr.mxu0 0.0
    %826 = vmatpush1.msra.mxu0 0.0
    %827 = vmatprep.subr.mxu0 0.0
    %828 = vmatpush1.msra.mxu0 0.0
    %829 = vmatprep.subr.mxu0 0.0
    %830 = vmatpush1.msra.mxu0 0.0
    %831 = vmatprep.subr.mxu0 0.0
    %832 = vmatpush1.msra.mxu0 0.0
    %833 = vmatprep.subr.mxu0 0.0
    %834 = vmatpush1.msra.mxu0 0.0
    %835 = vmatprep.subr.mxu0 0.0
    %836 = vmatpush1.msra.mxu0 0.0
    %837 = vmatprep.subr.mxu0 0.0
    %838 = vmatpush1.msra.mxu0 0.0
    %839 = vmatprep.subr.mxu0 0.0
    %840 = vmatpush1.msra.mxu0 0.0
    %841 = vmatprep.subr.mxu0 0.0
    %842 = vmatpush1.msra.mxu0 0.0
    %843 = vmatprep.subr.mxu0 0.0
    %844 = vmatpush1.msra.mxu0 0.0
    %845 = vmatprep.subr.mxu0 0.0
    %846 = vmatpush1.msra.mxu0 0.0
    %847 = vmatprep.mubr.f32.mxu0 0.0
    %848 = vmatmul.mubr.f32.gmra.mrb[0].mxu0 %v710
    %v849 = vpop.f32.mrb[0].mxu0
    %v850 = vadd.f32 0.0, %v849
    %v851 = vpop.f32.mrb[0].mxu0
    %v852 = vadd.f32 0.0, %v851
    %853 = vdwg.mxu0
    %854 = vmatprep.subr.mxu0 %v650
    %855 = vmatpush1.msra.mxu0 %v649
    %856 = vmatprep.subr.mxu0 %v658
    %857 = vmatpush1.msra.mxu0 %v657
    %858 = vmatprep.subr.mxu0 %v666
    %859 = vmatpush1.msra.mxu0 %v665
    %860 = vmatprep.subr.mxu0 %v674
    %861 = vmatpush1.msra.mxu0 %v673
    %862 = vmatprep.subr.mxu0 %v682
    %863 = vmatpush1.msra.mxu0 %v681
    %864 = vmatprep.subr.mxu0 %v690
    %865 = vmatpush1.msra.mxu0 %v689
    %866 = vmatprep.subr.mxu0 %v698
    %867 = vmatpush1.msra.mxu0 %v697
    %868 = vmatprep.subr.mxu0 %v706
    %869 = vmatpush1.msra.mxu0 %v705
    %870 = vmatprep.subr.mxu0 0.0
    %871 = vmatpush1.msra.mxu0 0.0
    %872 = vmatprep.subr.mxu0 0.0
    %873 = vmatpush1.msra.mxu0 0.0
    %874 = vmatprep.subr.mxu0 0.0
    %875 = vmatpush1.msra.mxu0 0.0
    %876 = vmatprep.subr.mxu0 0.0
    %877 = vmatpush1.msra.mxu0 0.0
    %878 = vmatprep.subr.mxu0 0.0
    %879 = vmatpush1.msra.mxu0 0.0
    %880 = vmatprep.subr.mxu0 0.0
    %881 = vmatpush1.msra.mxu0 0.0
    %882 = vmatprep.subr.mxu0 0.0
    %883 = vmatpush1.msra.mxu0 0.0
    %884 = vmatprep.subr.mxu0 0.0
    %885 = vmatpush1.msra.mxu0 0.0
    %886 = vmatprep.subr.mxu0 0.0
    %887 = vmatpush1.msra.mxu0 0.0
    %888 = vmatprep.subr.mxu0 0.0
    %889 = vmatpush1.msra.mxu0 0.0
    %890 = vmatprep.subr.mxu0 0.0
    %891 = vmatpush1.msra.mxu0 0.0
    %892 = vmatprep.subr.mxu0 0.0
    %893 = vmatpush1.msra.mxu0 0.0
    %894 = vmatprep.subr.mxu0 0.0
    %895 = vmatpush1.msra.mxu0 0.0
    %896 = vmatprep.subr.mxu0 0.0
    %897 = vmatpush1.msra.mxu0 0.0
    %898 = vmatprep.subr.mxu0 0.0
    %899 = vmatpush1.msra.mxu0 0.0
    %900 = vmatprep.subr.mxu0 0.0
    %901 = vmatpush1.msra.mxu0 0.0
    %902 = vmatprep.subr.mxu0 0.0
    %903 = vmatpush1.msra.mxu0 0.0
    %904 = vmatprep.subr.mxu0 0.0
    %905 = vmatpush1.msra.mxu0 0.0
    %906 = vmatprep.subr.mxu0 0.0
    %907 = vmatpush1.msra.mxu0 0.0
    %908 = vmatprep.subr.mxu0 0.0
    %909 = vmatpush1.msra.mxu0 0.0
    %910 = vmatprep.subr.mxu0 0.0
    %911 = vmatpush1.msra.mxu0 0.0
    %912 = vmatprep.subr.mxu0 0.0
    %913 = vmatpush1.msra.mxu0 0.0
    %914 = vmatprep.subr.mxu0 0.0
    %915 = vmatpush1.msra.mxu0 0.0
    %916 = vmatprep.subr.mxu0 0.0
    %917 = vmatpush1.msra.mxu0 0.0
    %918 = vmatprep.mubr.f32.mxu0 0.0
    %919 = vmatmul.mubr.f32.gmra.mrb[0].mxu0 %v710
    %v920 = vpop.f32.mrb[0].mxu0
    %v921 = vadd.f32 0.0, %v920
    %v922 = vpop.f32.mrb[0].mxu0
    %v923 = vadd.f32 0.0, %v922
    %924 = vdwg.mxu0
    %925 = vmatprep.subr.mxu0 %v652
    %926 = vmatpush1.msra.mxu0 %v651
    %927 = vmatprep.subr.mxu0 %v660
    %928 = vmatpush1.msra.mxu0 %v659
    %929 = vmatprep.subr.mxu0 %v668
    %930 = vmatpush1.msra.mxu0 %v667
    %931 = vmatprep.subr.mxu0 %v676
    %932 = vmatpush1.msra.mxu0 %v675
    %933 = vmatprep.subr.mxu0 %v684
    %934 = vmatpush1.msra.mxu0 %v683
    %935 = vmatprep.subr.mxu0 %v692
    %936 = vmatpush1.msra.mxu0 %v691
    %937 = vmatprep.subr.mxu0 %v700
    %938 = vmatpush1.msra.mxu0 %v699
    %939 = vmatprep.subr.mxu0 %v708
    %940 = vmatpush1.msra.mxu0 %v707
    %941 = vmatprep.subr.mxu0 0.0
    %942 = vmatpush1.msra.mxu0 0.0
    %943 = vmatprep.subr.mxu0 0.0
    %944 = vmatpush1.msra.mxu0 0.0
    %945 = vmatprep.subr.mxu0 0.0
    %946 = vmatpush1.msra.mxu0 0.0
    %947 = vmatprep.subr.mxu0 0.0
    %948 = vmatpush1.msra.mxu0 0.0
    %949 = vmatprep.subr.mxu0 0.0
    %950 = vmatpush1.msra.mxu0 0.0
    %951 = vmatprep.subr.mxu0 0.0
    %952 = vmatpush1.msra.mxu0 0.0
    %953 = vmatprep.subr.mxu0 0.0
    %954 = vmatpush1.msra.mxu0 0.0
    %955 = vmatprep.subr.mxu0 0.0
    %956 = vmatpush1.msra.mxu0 0.0
    %957 = vmatprep.subr.mxu0 0.0
    %958 = vmatpush1.msra.mxu0 0.0
    %959 = vmatprep.subr.mxu0 0.0
    %960 = vmatpush1.msra.mxu0 0.0
    %961 = vmatprep.subr.mxu0 0.0
    %962 = vmatpush1.msra.mxu0 0.0
    %963 = vmatprep.subr.mxu0 0.0
    %964 = vmatpush1.msra.mxu0 0.0
    %965 = vmatprep.subr.mxu0 0.0
    %966 = vmatpush1.msra.mxu0 0.0
    %967 = vmatprep.subr.mxu0 0.0
    %968 = vmatpush1.msra.mxu0 0.0
    %969 = vmatprep.subr.mxu0 0.0
    %970 = vmatpush1.msra.mxu0 0.0
    %971 = vmatprep.subr.mxu0 0.0
    %972 = vmatpush1.msra.mxu0 0.0
    %973 = vmatprep.subr.mxu0 0.0
    %974 = vmatpush1.msra.mxu0 0.0
    %975 = vmatprep.subr.mxu0 0.0
    %976 = vmatpush1.msra.mxu0 0.0
    %977 = vmatprep.subr.mxu0 0.0
    %978 = vmatpush1.msra.mxu0 0.0
    %979 = vmatprep.subr.mxu0 0.0
    %980 = vmatpush1.msra.mxu0 0.0
    %981 = vmatprep.subr.mxu0 0.0
    %982 = vmatpush1.msra.mxu0 0.0
    %983 = vmatprep.subr.mxu0 0.0
    %984 = vmatpush1.msra.mxu0 0.0
    %985 = vmatprep.subr.mxu0 0.0
    %986 = vmatpush1.msra.mxu0 0.0
    %987 = vmatprep.subr.mxu0 0.0
    %988 = vmatpush1.msra.mxu0 0.0
    %989 = vmatprep.mubr.f32.mxu0 0.0
    %990 = vmatmul.mubr.f32.gmra.mrb[0].mxu0 %v710
    %v991 = vpop.f32.mrb[0].mxu0
    %v992 = vadd.f32 0.0, %v991
    %v993 = vpop.f32.mrb[0].mxu0
    %v994 = vadd.f32 0.0, %v993
    %995 = vdwg.mxu0
    %v1004 = vcombine.low %v779, %v781
    %v1005 = vcombine.low %v850, %v852
    %v1007 = vunpack.c.l.s4 1983009808
    %v1008 = vunpack.c.0.s8 %v1007
    %v1009 = vlaneseq
    %v1010 = vshrl.u32 %v1009, 7
    %v1011 = vsub.s32 %v1008, %v1010
    %v1012 = vrot.slane %v1004, %v1011
    %v1014 = vunpack.c.l.s4 1983009808
    %v1015 = vunpack.c.0.s8 %v1014
    %v1016 = vlaneseq
    %v1017 = vshrl.u32 %v1016, 7
    %v1018 = vsub.s32 %v1015, %v1017
    %v1019 = vrot.slane %v1005, %v1018
    %v1020 = vcombine.low %v1012, %v1019
    %v1021 = vcombine.low %v921, %v923
    %v1022 = vcombine.low %v992, %v994
    %v1024 = vunpack.c.l.s4 1983009808
    %v1025 = vunpack.c.0.s8 %v1024
    %v1026 = vlaneseq
    %v1027 = vshrl.u32 %v1026, 7
    %v1028 = vsub.s32 %v1025, %v1027
    %v1029 = vrot.slane %v1021, %v1028
    %v1031 = vunpack.c.l.s4 1983009808
    %v1032 = vunpack.c.0.s8 %v1031
    %v1033 = vlaneseq
    %v1034 = vshrl.u32 %v1033, 7
    %v1035 = vsub.s32 %v1032, %v1034
    %v1036 = vrot.slane %v1022, %v1035
    %v1037 = vcombine.low %v1029, %v1036
    %v1040 = vmul.f32 %v21, %v1020
    %v1041 = vmul.f32 %v22, %v1037
    %1042 = vst [vmem:[#allocation2] sm:$0xff] %v1040
    %1043 = vst [vmem:[#allocation2 + $0x8] sm:$0xff] %v1041
    // Predicated region
    $region22: #{tpu_custom_call.1} parent=1 // pred_check
      _
    $region23: #{tpu_custom_call.1} parent=1 // pred_check_branch
      %1045 = sbr.rel (0) target = $region25
    $region24: #{tpu_custom_call.1} parent=1 // pred_region
      %s1047 = ssub.s32 256, 256
      %1048 = vsyncadd [#allocation3], %s1047
      %s1050 = sshll.u32 [#allocation2], 4
      %s1051 = int_to_ptr.vmem [resolvable:$true] %s1050
      %1053 = dma.vmem_to_hbm [thread:$0]  %s1051, 256, %s5, [#allocation3]
    $region25: #{tpu_custom_call.1} parent=1 // pred_fallthru
      _
    // Predicated region
    $region26: #{tpu_custom_call.1} parent=1 // pred_check
      _
    $region27: #{tpu_custom_call.1} parent=1 // pred_check_branch
      %1055 = sbr.rel (0) target = $region29
    $region28: #{tpu_custom_call.1} parent=1 // pred_region
      %1056 = dma.done [#allocation3], 256
    $region29: #{tpu_custom_call.1} parent=1 // pred_fallthru
      _
    %1057 = vsyncpa [#allocation3], 1

</llo_original>
